<compile_context>
chip_gen: v5e
topology: v5e:2x2
jax: 0.10.0
libtpu: 0.0.40
codegen_flags: <defaults>
</compile_context>

<pallas_src>
import numpy as np
import jax
import jax.numpy as jnp
from jax.experimental import pallas as pl
from jax.experimental.pallas import tpu as pltpu

# --- config ---
INPUT_DIM = 16
N_D = 8
N_STEPS = 3
VBS = 128
BATCH = 16
BN_EPS = 1e-5
SQRT_HALF = 0.7071067811865476  # sqrt(0.5), hoisted Python constant


# ----------------------------------------------------------------------------
# Pure-JAX Ghost BatchNorm normalization (reference-path helper, 2-D input).
# ----------------------------------------------------------------------------
def _gbn_norm(h, vbs=VBS):
    """Training-mode GBN normalization (per-virtual-batch stats, biased var)."""
    batch = h.shape[0]
    n_chunks = -(-batch // vbs)          # ceil(batch / vbs)  (torch.chunk count)
    csize = -(-batch // n_chunks)        # torch.chunk chunk size
    parts = []
    for c in range(n_chunks):
        y = h[c * csize: min(batch, (c + 1) * csize)]
        m = jnp.mean(y, axis=0, keepdims=True)
        v = jnp.mean(jnp.square(y - m), axis=0, keepdims=True)   # biased variance
        parts.append((y - m) * jax.lax.rsqrt(v + BN_EPS))
    return parts[0] if n_chunks == 1 else jnp.concatenate(parts, axis=0)


# ----------------------------------------------------------------------------
# In-kernel Ghost BatchNorm with affine folded into one scale/shift.
#   h:            (S, B, n_d)   gamma/beta: (S, 1, n_d)
# Stats are per (step, virtual batch); B=16 < vbs=128 -> one chunk per step.
# ----------------------------------------------------------------------------
def _gbn_affine(h, gamma, beta, vbs=VBS):
    s, b, d = h.shape
    n_chunks = -(-b // vbs)
    if n_chunks == 1:
        m = jnp.mean(h, axis=1, keepdims=True)
        v = jnp.mean(jnp.square(h - m), axis=1, keepdims=True)   # biased variance
        scale = gamma * jax.lax.rsqrt(v + BN_EPS)
        return h * scale + (beta - m * scale)
    # multi-virtual-batch path (not hit at BATCH=16; kept for robustness)
    csize = -(-b // n_chunks)
    assert b % csize == 0, "uneven virtual-batch chunks not supported in-kernel"
    hc = h.reshape(s, n_chunks, csize, d)
    m = jnp.mean(hc, axis=2, keepdims=True)
    v = jnp.mean(jnp.square(hc - m), axis=2, keepdims=True)
    scale = gamma[:, None] * jax.lax.rsqrt(v + BN_EPS)
    out = hc * scale + (beta[:, None] - m * scale)
    return out.reshape(s, b, d)


# ----------------------------------------------------------------------------
# Kernel: whole decoder forward in one invocation.
# ----------------------------------------------------------------------------
def decoder_kernel(x_ref, w_sh_ref, w_sp_ref, bn_ref, w_rec_ref, out_ref):
    # x_ref:     (S, B, n_d)        stacked step outputs
    # w_sh_ref:  (2, n_d, n_d)      shared fc weight halves [linear, gate]
    # w_sp_ref:  (2, S, n_d, n_d)   per-step specific fc weight halves [linear, gate]
    # bn_ref:    (S, 8, n_d)        per-step GBN affine halves:
    #            rows 0..7 = g_sh_lin, g_sh_gate, b_sh_lin, b_sh_gate,
    #                        g_sp_lin, g_sp_gate, b_sp_lin, b_sp_gate
    # w_rec_ref: (n_d, input_dim)
    s = x_ref.shape[0]

    x = x_ref[...]                                                # (S, B, n_d)
    bn = bn_ref[...]                                              # (S, 8, n_d)

    # --- shared GLU fc (weight shared across steps), both halves, all steps ---
    w_sh_lin = jnp.broadcast_to(w_sh_ref[0], (s, N_D, N_D))       # hoisted, one-time
    w_sh_gate = jnp.broadcast_to(w_sh_ref[1], (s, N_D, N_D))
    h_lin = jnp.einsum('sbd,sde->sbe', x, w_sh_lin,
                       preferred_element_type=jnp.float32)        # (S, B, n_d)
    h_gate = jnp.einsum('sbd,sde->sbe', x, w_sh_gate,
                        preferred_element_type=jnp.float32)

    # --- shared GLU layer: per-step GBN affine + sigmoid gate, all steps at once ---
    hl = _gbn_affine(h_lin, bn[:, 0:1], bn[:, 2:3])
    hg = _gbn_affine(h_gate, bn[:, 1:2], bn[:, 3:4])
    y = hl * jax.nn.sigmoid(hg)                                   # (S, B, n_d)

    # --- step-specific GLU layer (per-step weights), step-batched on the MXU ---
    h2l = jnp.einsum('sbd,sde->sbe', y, w_sp_ref[0],
                     preferred_element_type=jnp.float32)
    h2g = jnp.einsum('sbd,sde->sbe', y, w_sp_ref[1],
                     preferred_element_type=jnp.float32)
    h2l = _gbn_affine(h2l, bn[:, 4:5], bn[:, 6:7])
    h2g = _gbn_affine(h2g, bn[:, 5:6], bn[:, 7:8])
    z = h2l * jax.nn.sigmoid(h2g)                                 # (S, B, n_d)

    # residual + sqrt(0.5) scale per step, summed over steps, then reconstruction
    res = jnp.sum(y + z, axis=0) * SQRT_HALF                      # (B, n_d)
    out_ref[...] = jnp.dot(res, w_rec_ref[...],
                           preferred_element_type=jnp.float32).astype(out_ref.dtype)


# ----------------------------------------------------------------------------
# Host wrapper: pack params once, single pallas_call, everything in VMEM.
# ----------------------------------------------------------------------------
def tabnet_decoder(steps_output, params):
    n_steps = len(steps_output)
    b = steps_output[0].shape[0]

    x = jnp.stack(steps_output, axis=0)                           # (S, B, n_d)

    # Split GLU fc weights into linear/gate halves (host-side, one-time).
    w_sh = params["w_sh"]                                         # (n_d, 2*n_d)
    w_sh_pack = jnp.stack([w_sh[:, :N_D], w_sh[:, N_D:]], axis=0)           # (2, n_d, n_d)
    w_sp = params["w_sp"]                                         # (S, n_d, 2*n_d)
    w_sp_pack = jnp.stack([w_sp[:, :, :N_D], w_sp[:, :, N_D:]], axis=0)     # (2, S, n_d, n_d)

    # Pack per-step GBN affine params (matching halves) into one slab.
    g_sh, b_sh = params["g_sh"], params["b_sh"]                   # (S, 2*n_d)
    g_sp, b_sp = params["g_sp"], params["b_sp"]
    bn_pack = jnp.stack([
        g_sh[:, :N_D], g_sh[:, N_D:], b_sh[:, :N_D], b_sh[:, N_D:],
        g_sp[:, :N_D], g_sp[:, N_D:], b_sp[:, :N_D], b_sp[:, N_D:],
    ], axis=1)                                                    # (S, 8, n_d)

    vmem = pl.BlockSpec(memory_space=pltpu.MemorySpace.VMEM)
    return pl.pallas_call(
        decoder_kernel,
        out_shape=jax.ShapeDtypeStruct((b, INPUT_DIM), jnp.float32),
        in_specs=[vmem, vmem, vmem, vmem, vmem],
        out_specs=vmem,
    )(x, w_sh_pack, w_sp_pack, bn_pack, params["w_rec"])


# ----------------------------------------------------------------------------
# Pure-JAX reference of the same forward pass (unsplit params).
# ----------------------------------------------------------------------------
def ref_forward(steps_output, params):
    res = jnp.zeros((steps_output[0].shape[0], N_D), jnp.float32)
    for s in range(len(steps_output)):
        x = steps_output[s]
        h = x @ params["w_sh"]
        h = _gbn_norm(h) * params["g_sh"][s] + params["b_sh"][s]
        y = h[:, :N_D] * jax.nn.sigmoid(h[:, N_D:])
        h2 = y @ params["w_sp"][s]
        h2 = _gbn_norm(h2) * params["g_sp"][s] + params["b_sp"][s]
        z = h2[:, :N_D] * jax.nn.sigmoid(h2[:, N_D:])
        res = res + (y + z) * SQRT_HALF
    return res @ params["w_rec"]


if __name__ == "__main__":
    key = jax.random.PRNGKey(0)
    ks = jax.random.split(key, 8)
    params = {
        # shared fc weight (Linear(n_d, 2*n_d, bias=False)), stored (in, out)
        "w_sh": 0.2 * jax.random.normal(ks[0], (N_D, 2 * N_D), jnp.float32),
        # per-step GBN affine params of the shared GLU layer
        "g_sh": 1.0 + 0.1 * jax.random.normal(ks[1], (N_STEPS, 2 * N_D), jnp.float32),
        "b_sh": 0.1 * jax.random.normal(ks[2], (N_STEPS, 2 * N_D), jnp.float32),
        # per-step independent fc weights + GBN affine params
        "w_sp": 0.2 * jax.random.normal(ks[3], (N_STEPS, N_D, 2 * N_D), jnp.float32),
        "g_sp": 1.0 + 0.1 * jax.random.normal(ks[4], (N_STEPS, 2 * N_D), jnp.float32),
        "b_sp": 0.1 * jax.random.normal(ks[5], (N_STEPS, 2 * N_D), jnp.float32),
        # reconstruction layer Linear(n_d, input_dim, bias=False), stored (in, out)
        "w_rec": 0.2 * jax.random.normal(ks[6], (N_D, INPUT_DIM), jnp.float32),
    }
    steps_output = [jax.random.normal(k, (BATCH, N_D), jnp.float32)
                    for k in jax.random.split(ks[7], N_STEPS)]

    out = jax.block_until_ready(tabnet_decoder(steps_output, params))
    ref = ref_forward(steps_output, params)
    np.testing.assert_allclose(np.asarray(out), np.asarray(ref), rtol=2e-3, atol=2e-3)
    print("KERNEL_OK")
</pallas_src>

<mosaic_0001>
module attributes {stable_mosaic.version = 11 : i64} {
  func.func @decoder_kernel(%arg0: memref<3x16x8xf32, #tpu.memory_space<vmem>>, %arg1: memref<2x8x8xf32, #tpu.memory_space<vmem>>, %arg2: memref<2x3x8x8xf32, #tpu.memory_space<vmem>>, %arg3: memref<3x8x8xf32, #tpu.memory_space<vmem>>, %arg4: memref<8x16xf32, #tpu.memory_space<vmem>>, %arg5: memref<16x16xf32, #tpu.memory_space<vmem>>) attributes {dimension_semantics = [], scalar_prefetch = 0 : i64, scratch_operands = 0 : i64, tpu.core_type = #tpu.core_type<tc>} {
    %c0 = arith.constant 0 : index
    %c0_0 = arith.constant 0 : index
    %c0_1 = arith.constant 0 : index
    %0 = vector.load %arg0[%c0, %c0_0, %c0_1] : memref<3x16x8xf32, #tpu.memory_space<vmem>>, vector<3x16x8xf32>
    %c0_2 = arith.constant 0 : index
    %c0_3 = arith.constant 0 : index
    %c0_4 = arith.constant 0 : index
    %1 = vector.load %arg3[%c0_2, %c0_3, %c0_4] : memref<3x8x8xf32, #tpu.memory_space<vmem>>, vector<3x8x8xf32>
    %c0_5 = arith.constant 0 : index
    %c0_6 = arith.constant 0 : index
    %c0_7 = arith.constant 0 : index
    %2 = vector.load %arg1[%c0_5, %c0_6, %c0_7] : memref<2x8x8xf32, #tpu.memory_space<vmem>>, vector<1x8x8xf32>
    %3 = vector.shape_cast %2 : vector<1x8x8xf32> to vector<8x8xf32>
    %4 = vector.shape_cast %3 : vector<8x8xf32> to vector<1x8x8xf32>
    %5 = vector.broadcast %4 : vector<1x8x8xf32> to vector<3x8x8xf32>
    %c1 = arith.constant 1 : index
    %c0_8 = arith.constant 0 : index
    %c0_9 = arith.constant 0 : index
    %6 = vector.load %arg1[%c1, %c0_8, %c0_9] : memref<2x8x8xf32, #tpu.memory_space<vmem>>, vector<1x8x8xf32>
    %7 = vector.shape_cast %6 : vector<1x8x8xf32> to vector<8x8xf32>
    %8 = vector.shape_cast %7 : vector<8x8xf32> to vector<1x8x8xf32>
    %9 = vector.broadcast %8 : vector<1x8x8xf32> to vector<3x8x8xf32>
    "tpu.trace_start"() <{level = 10 : i32, message = "sbd,sde->sbe"}> : () -> ()
    %cst = arith.constant dense<0.000000e+00> : vector<3x16x8xf32>
    %10 = tpu.matmul %0, %5, %cst {dimension_numbers = #tpu.dot_dimension_numbers<[2], [1], [1], [2], [0, 0, 0, 1, 1, 2], [0], [0]>} : vector<3x16x8xf32>, vector<3x8x8xf32>, vector<3x16x8xf32> -> vector<3x16x8xf32>
    %cst_10 = arith.constant dense<0.000000e+00> : vector<3x16x8xf32>
    %11 = tpu.matmul %0, %9, %cst_10 {dimension_numbers = #tpu.dot_dimension_numbers<[2], [1], [1], [2], [0, 0, 0, 1, 1, 2], [0], [0]>} : vector<3x16x8xf32>, vector<3x8x8xf32>, vector<3x16x8xf32> -> vector<3x16x8xf32>
    "tpu.trace_stop"() : () -> ()
    %12 = vector.extract_strided_slice %1 {offsets = [0, 0, 0], sizes = [3, 1, 8], strides = [1, 1, 1]} : vector<3x8x8xf32> to vector<3x1x8xf32>
    %13 = vector.extract_strided_slice %1 {offsets = [0, 2, 0], sizes = [3, 1, 8], strides = [1, 1, 1]} : vector<3x8x8xf32> to vector<3x1x8xf32>
    %cst_11 = arith.constant dense<0.000000e+00> : vector<3x8xf32>
    %14 = vector.multi_reduction <add>, %10, %cst_11 [1] : vector<3x16x8xf32> to vector<3x8xf32>
    %15 = vector.shape_cast %14 : vector<3x8xf32> to vector<3x1x8xf32>
    %cst_12 = arith.constant 1.600000e+01 : f32
    %16 = vector.broadcast %cst_12 : f32 to vector<3x1x8xf32>
    %17 = arith.divf %15, %16 : vector<3x1x8xf32>
    %18 = vector.broadcast %17 : vector<3x1x8xf32> to vector<3x16x8xf32>
    %19 = arith.subf %10, %18 : vector<3x16x8xf32>
    %20 = arith.mulf %19, %19 : vector<3x16x8xf32>
    %cst_13 = arith.constant dense<0.000000e+00> : vector<3x8xf32>
    %21 = vector.multi_reduction <add>, %20, %cst_13 [1] : vector<3x16x8xf32> to vector<3x8xf32>
    %22 = vector.shape_cast %21 : vector<3x8xf32> to vector<3x1x8xf32>
    %cst_14 = arith.constant 1.600000e+01 : f32
    %23 = vector.broadcast %cst_14 : f32 to vector<3x1x8xf32>
    %24 = arith.divf %22, %23 : vector<3x1x8xf32>
    %cst_15 = arith.constant 9.99999974E-6 : f32
    %25 = vector.broadcast %cst_15 : f32 to vector<3x1x8xf32>
    %26 = arith.addf %24, %25 : vector<3x1x8xf32>
    %27 = math.rsqrt %26 : vector<3x1x8xf32>
    %28 = arith.mulf %12, %27 : vector<3x1x8xf32>
    %29 = vector.broadcast %28 : vector<3x1x8xf32> to vector<3x16x8xf32>
    %30 = arith.mulf %10, %29 : vector<3x16x8xf32>
    %31 = arith.mulf %17, %28 : vector<3x1x8xf32>
    %32 = arith.subf %13, %31 : vector<3x1x8xf32>
    %33 = vector.broadcast %32 : vector<3x1x8xf32> to vector<3x16x8xf32>
    %34 = arith.addf %30, %33 : vector<3x16x8xf32>
    %35 = vector.extract_strided_slice %1 {offsets = [0, 1, 0], sizes = [3, 1, 8], strides = [1, 1, 1]} : vector<3x8x8xf32> to vector<3x1x8xf32>
    %36 = vector.extract_strided_slice %1 {offsets = [0, 3, 0], sizes = [3, 1, 8], strides = [1, 1, 1]} : vector<3x8x8xf32> to vector<3x1x8xf32>
    %cst_16 = arith.constant dense<0.000000e+00> : vector<3x8xf32>
    %37 = vector.multi_reduction <add>, %11, %cst_16 [1] : vector<3x16x8xf32> to vector<3x8xf32>
    %38 = vector.shape_cast %37 : vector<3x8xf32> to vector<3x1x8xf32>
    %cst_17 = arith.constant 1.600000e+01 : f32
    %39 = vector.broadcast %cst_17 : f32 to vector<3x1x8xf32>
    %40 = arith.divf %38, %39 : vector<3x1x8xf32>
    %41 = vector.broadcast %40 : vector<3x1x8xf32> to vector<3x16x8xf32>
    %42 = arith.subf %11, %41 : vector<3x16x8xf32>
    %43 = arith.mulf %42, %42 : vector<3x16x8xf32>
    %cst_18 = arith.constant dense<0.000000e+00> : vector<3x8xf32>
    %44 = vector.multi_reduction <add>, %43, %cst_18 [1] : vector<3x16x8xf32> to vector<3x8xf32>
    %45 = vector.shape_cast %44 : vector<3x8xf32> to vector<3x1x8xf32>
    %cst_19 = arith.constant 1.600000e+01 : f32
    %46 = vector.broadcast %cst_19 : f32 to vector<3x1x8xf32>
    %47 = arith.divf %45, %46 : vector<3x1x8xf32>
    %cst_20 = arith.constant 9.99999974E-6 : f32
    %48 = vector.broadcast %cst_20 : f32 to vector<3x1x8xf32>
    %49 = arith.addf %47, %48 : vector<3x1x8xf32>
    %50 = math.rsqrt %49 : vector<3x1x8xf32>
    %51 = arith.mulf %35, %50 : vector<3x1x8xf32>
    %52 = vector.broadcast %51 : vector<3x1x8xf32> to vector<3x16x8xf32>
    %53 = arith.mulf %11, %52 : vector<3x16x8xf32>
    %54 = arith.mulf %40, %51 : vector<3x1x8xf32>
    %55 = arith.subf %36, %54 : vector<3x1x8xf32>
    %56 = vector.broadcast %55 : vector<3x1x8xf32> to vector<3x16x8xf32>
    %57 = arith.addf %53, %56 : vector<3x16x8xf32>
    %58 = arith.negf %57 : vector<3x16x8xf32>
    %59 = math.exp %58 : vector<3x16x8xf32>
    %cst_21 = arith.constant 1.000000e+00 : f32
    %60 = vector.broadcast %cst_21 : f32 to vector<3x16x8xf32>
    %61 = arith.addf %60, %59 : vector<3x16x8xf32>
    %62 = arith.divf %60, %61 : vector<3x16x8xf32>
    %63 = arith.mulf %34, %62 : vector<3x16x8xf32>
    %c0_22 = arith.constant 0 : index
    %c0_23 = arith.constant 0 : index
    %c0_24 = arith.constant 0 : index
    %c0_25 = arith.constant 0 : index
    %64 = vector.load %arg2[%c0_22, %c0_23, %c0_24, %c0_25] : memref<2x3x8x8xf32, #tpu.memory_space<vmem>>, vector<1x3x8x8xf32>
    %65 = vector.shape_cast %64 : vector<1x3x8x8xf32> to vector<3x8x8xf32>
    "tpu.trace_start"() <{level = 10 : i32, message = "sbd,sde->sbe"}> : () -> ()
    %cst_26 = arith.constant dense<0.000000e+00> : vector<3x16x8xf32>
    %66 = tpu.matmul %63, %65, %cst_26 {dimension_numbers = #tpu.dot_dimension_numbers<[2], [1], [1], [2], [0, 0, 0, 1, 1, 2], [0], [0]>} : vector<3x16x8xf32>, vector<3x8x8xf32>, vector<3x16x8xf32> -> vector<3x16x8xf32>
    "tpu.trace_stop"() : () -> ()
    %c1_27 = arith.constant 1 : index
    %c0_28 = arith.constant 0 : index
    %c0_29 = arith.constant 0 : index
    %c0_30 = arith.constant 0 : index
    %67 = vector.load %arg2[%c1_27, %c0_28, %c0_29, %c0_30] : memref<2x3x8x8xf32, #tpu.memory_space<vmem>>, vector<1x3x8x8xf32>
    %68 = vector.shape_cast %67 : vector<1x3x8x8xf32> to vector<3x8x8xf32>
    "tpu.trace_start"() <{level = 10 : i32, message = "sbd,sde->sbe"}> : () -> ()
    %cst_31 = arith.constant dense<0.000000e+00> : vector<3x16x8xf32>
    %69 = tpu.matmul %63, %68, %cst_31 {dimension_numbers = #tpu.dot_dimension_numbers<[2], [1], [1], [2], [0, 0, 0, 1, 1, 2], [0], [0]>} : vector<3x16x8xf32>, vector<3x8x8xf32>, vector<3x16x8xf32> -> vector<3x16x8xf32>
    "tpu.trace_stop"() : () -> ()
    %70 = vector.extract_strided_slice %1 {offsets = [0, 4, 0], sizes = [3, 1, 8], strides = [1, 1, 1]} : vector<3x8x8xf32> to vector<3x1x8xf32>
    %71 = vector.extract_strided_slice %1 {offsets = [0, 6, 0], sizes = [3, 1, 8], strides = [1, 1, 1]} : vector<3x8x8xf32> to vector<3x1x8xf32>
    %cst_32 = arith.constant dense<0.000000e+00> : vector<3x8xf32>
    %72 = vector.multi_reduction <add>, %66, %cst_32 [1] : vector<3x16x8xf32> to vector<3x8xf32>
    %73 = vector.shape_cast %72 : vector<3x8xf32> to vector<3x1x8xf32>
    %cst_33 = arith.constant 1.600000e+01 : f32
    %74 = vector.broadcast %cst_33 : f32 to vector<3x1x8xf32>
    %75 = arith.divf %73, %74 : vector<3x1x8xf32>
    %76 = vector.broadcast %75 : vector<3x1x8xf32> to vector<3x16x8xf32>
    %77 = arith.subf %66, %76 : vector<3x16x8xf32>
    %78 = arith.mulf %77, %77 : vector<3x16x8xf32>
    %cst_34 = arith.constant dense<0.000000e+00> : vector<3x8xf32>
    %79 = vector.multi_reduction <add>, %78, %cst_34 [1] : vector<3x16x8xf32> to vector<3x8xf32>
    %80 = vector.shape_cast %79 : vector<3x8xf32> to vector<3x1x8xf32>
    %cst_35 = arith.constant 1.600000e+01 : f32
    %81 = vector.broadcast %cst_35 : f32 to vector<3x1x8xf32>
    %82 = arith.divf %80, %81 : vector<3x1x8xf32>
    %cst_36 = arith.constant 9.99999974E-6 : f32
    %83 = vector.broadcast %cst_36 : f32 to vector<3x1x8xf32>
    %84 = arith.addf %82, %83 : vector<3x1x8xf32>
    %85 = math.rsqrt %84 : vector<3x1x8xf32>
    %86 = arith.mulf %70, %85 : vector<3x1x8xf32>
    %87 = vector.broadcast %86 : vector<3x1x8xf32> to vector<3x16x8xf32>
    %88 = arith.mulf %66, %87 : vector<3x16x8xf32>
    %89 = arith.mulf %75, %86 : vector<3x1x8xf32>
    %90 = arith.subf %71, %89 : vector<3x1x8xf32>
    %91 = vector.broadcast %90 : vector<3x1x8xf32> to vector<3x16x8xf32>
    %92 = arith.addf %88, %91 : vector<3x16x8xf32>
    %93 = vector.extract_strided_slice %1 {offsets = [0, 5, 0], sizes = [3, 1, 8], strides = [1, 1, 1]} : vector<3x8x8xf32> to vector<3x1x8xf32>
    %94 = vector.extract_strided_slice %1 {offsets = [0, 7, 0], sizes = [3, 1, 8], strides = [1, 1, 1]} : vector<3x8x8xf32> to vector<3x1x8xf32>
    %cst_37 = arith.constant dense<0.000000e+00> : vector<3x8xf32>
    %95 = vector.multi_reduction <add>, %69, %cst_37 [1] : vector<3x16x8xf32> to vector<3x8xf32>
    %96 = vector.shape_cast %95 : vector<3x8xf32> to vector<3x1x8xf32>
    %cst_38 = arith.constant 1.600000e+01 : f32
    %97 = vector.broadcast %cst_38 : f32 to vector<3x1x8xf32>
    %98 = arith.divf %96, %97 : vector<3x1x8xf32>
    %99 = vector.broadcast %98 : vector<3x1x8xf32> to vector<3x16x8xf32>
    %100 = arith.subf %69, %99 : vector<3x16x8xf32>
    %101 = arith.mulf %100, %100 : vector<3x16x8xf32>
    %cst_39 = arith.constant dense<0.000000e+00> : vector<3x8xf32>
    %102 = vector.multi_reduction <add>, %101, %cst_39 [1] : vector<3x16x8xf32> to vector<3x8xf32>
    %103 = vector.shape_cast %102 : vector<3x8xf32> to vector<3x1x8xf32>
    %cst_40 = arith.constant 1.600000e+01 : f32
    %104 = vector.broadcast %cst_40 : f32 to vector<3x1x8xf32>
    %105 = arith.divf %103, %104 : vector<3x1x8xf32>
    %cst_41 = arith.constant 9.99999974E-6 : f32
    %106 = vector.broadcast %cst_41 : f32 to vector<3x1x8xf32>
    %107 = arith.addf %105, %106 : vector<3x1x8xf32>
    %108 = math.rsqrt %107 : vector<3x1x8xf32>
    %109 = arith.mulf %93, %108 : vector<3x1x8xf32>
    %110 = vector.broadcast %109 : vector<3x1x8xf32> to vector<3x16x8xf32>
    %111 = arith.mulf %69, %110 : vector<3x16x8xf32>
    %112 = arith.mulf %98, %109 : vector<3x1x8xf32>
    %113 = arith.subf %94, %112 : vector<3x1x8xf32>
    %114 = vector.broadcast %113 : vector<3x1x8xf32> to vector<3x16x8xf32>
    %115 = arith.addf %111, %114 : vector<3x16x8xf32>
    %116 = arith.negf %115 : vector<3x16x8xf32>
    %117 = math.exp %116 : vector<3x16x8xf32>
    %cst_42 = arith.constant 1.000000e+00 : f32
    %118 = vector.broadcast %cst_42 : f32 to vector<3x16x8xf32>
    %119 = arith.addf %118, %117 : vector<3x16x8xf32>
    %120 = arith.divf %118, %119 : vector<3x16x8xf32>
    %121 = arith.mulf %92, %120 : vector<3x16x8xf32>
    %122 = arith.addf %63, %121 : vector<3x16x8xf32>
    %cst_43 = arith.constant dense<0.000000e+00> : vector<16x8xf32>
    %123 = vector.multi_reduction <add>, %122, %cst_43 [0] : vector<3x16x8xf32> to vector<16x8xf32>
    %cst_44 = arith.constant 0.707106769 : f32
    %124 = vector.broadcast %cst_44 : f32 to vector<16x8xf32>
    %125 = arith.mulf %123, %124 : vector<16x8xf32>
    %c0_45 = arith.constant 0 : index
    %c0_46 = arith.constant 0 : index
    %126 = vector.load %arg4[%c0_45, %c0_46] : memref<8x16xf32, #tpu.memory_space<vmem>>, vector<8x16xf32>
    %cst_47 = arith.constant dense<0.000000e+00> : vector<16x16xf32>
    %127 = tpu.matmul %125, %126, %cst_47 {dimension_numbers = #tpu.dot_dimension_numbers<[1], [0], [0], [1], [0, 0, 1, 1], [], []>} : vector<16x8xf32>, vector<8x16xf32>, vector<16x16xf32> -> vector<16x16xf32>
    %c0_48 = arith.constant 0 : index
    %c0_49 = arith.constant 0 : index
    %128 = vector.load %arg5[%c0_48, %c0_49] : memref<16x16xf32, #tpu.memory_space<vmem>>, vector<16x16xf32>
    tpu.vector_store %arg5[%c0_48, %c0_49], %127 {strides = array<i32>} : memref<16x16xf32, #tpu.memory_space<vmem>>, vector<16x16xf32>,
    return
  }
}

</mosaic_0001>

<llo_original>
// kernel: tpu_custom_call.1
$region0: #{tpu_custom_call.1}
  #allocation0 [shape = 'u32[]', space=smem, size = 0x4, offset = 0x4, fixed_abs, tag = 'smem constant byte address 0x4 - core index']
  #allocation1 [shape = 'u32[72,128]{1,0:T(1,128)}', space=vmem, size = 0x9000, scoped, tag = 'internal scratch']
  %s0 = inlined_call_operand.vmem [shape: f32[3,16,8], index: 0, kind: input, shape index: {}]
  %s1 = inlined_call_operand.hbm [shape: f32[2,8,8], index: 1, kind: input, shape index: {}]
  %s2 = inlined_call_operand.vmem [shape: f32[2,3,8,8], index: 2, kind: input, shape index: {}]
  %s3 = inlined_call_operand.vmem [shape: f32[3,8,8], index: 3, kind: input, shape index: {}]
  %s4 = inlined_call_operand.hbm [shape: f32[8,16], index: 4, kind: input, shape index: {}]
  %s5 = inlined_call_operand.hbm [shape: f32[16,16], index: 5, kind: output, shape index: {}]
  %s6 = sld [smem:[#allocation0]]
  $region38: #{tpu_custom_call.1} parent=0
    _
  %s8 = ssub.s32 1, %s6
  %s9 = scalar_select 0, %s8, %s6
  $region1: #{tpu_custom_call.1} parent=0
    #allocation2 [shape = 'u8[8192]{0}', space=vmem, size = 0x2000, scoped, tag = 'input window, operand 1, single buffered']
    #allocation3 [shape = 's32[1]{0}', space=sflag, size = 0x4, scoped, tag = 'scoped memory for tpu_custom_call.1']
    #allocation4 [shape = 's32[1]{0}', space=sflag, size = 0x4, scoped, tag = 'scoped memory for tpu_custom_call.1']
    #allocation5 [shape = 'u8[4096]{0}', space=vmem, size = 0x1000, scoped, tag = 'input window, operand 4, single buffered']
    #allocation6 [shape = 's32[1]{0}', space=sflag, size = 0x4, scoped, tag = 'scoped memory for tpu_custom_call.1']
    #allocation7 [shape = 'u8[8192]{0}', space=vmem, size = 0x2000, scoped, tag = 'output window, operand 0, single buffered']
    %10 = vsyncpa [#allocation3], 0
    %11 = vsyncpa [#allocation6], 0
    %12 = vsyncpa [#allocation4], 0
    // Predicated region
    $region2: #{tpu_custom_call.1} parent=1 // pred_check
      _
    $region3: #{tpu_custom_call.1} parent=1 // pred_check_branch
      %14 = sbr.rel (0) target = $region5
    $region4: #{tpu_custom_call.1} parent=1 // pred_region
      _
    $region5: #{tpu_custom_call.1} parent=1 // pred_fallthru
      _
    // Predicated region
    $region6: #{tpu_custom_call.1} parent=1 // pred_check
      _
    $region7: #{tpu_custom_call.1} parent=1 // pred_check_branch
      %16 = sbr.rel (0) target = $region9
    $region8: #{tpu_custom_call.1} parent=1 // pred_region
      %18 = vsyncadd [#allocation3], 0
      %s19 = sshll.u32 %s1, 4
      %s20 = int_to_ptr.hbm [resolvable:$true] %s19
      %s21 = sshll.u32 [#allocation2], 4
      %s22 = int_to_ptr.vmem [resolvable:$true] %s21
      %27 = dma.hbm_to_vmem [thread:$0]  %s20, 256, %s22, [#allocation3], 128, 128, 8
    $region9: #{tpu_custom_call.1} parent=1 // pred_fallthru
      _
    // Predicated region
    $region10: #{tpu_custom_call.1} parent=1 // pred_check
      _
    $region11: #{tpu_custom_call.1} parent=1 // pred_check_branch
      %29 = sbr.rel (0) target = $region13
    $region12: #{tpu_custom_call.1} parent=1 // pred_region
      _
    $region13: #{tpu_custom_call.1} parent=1 // pred_fallthru
      _
    // Predicated region
    $region14: #{tpu_custom_call.1} parent=1 // pred_check
      _
    $region15: #{tpu_custom_call.1} parent=1 // pred_check_branch
      %31 = sbr.rel (0) target = $region17
    $region16: #{tpu_custom_call.1} parent=1 // pred_region
      _
    $region17: #{tpu_custom_call.1} parent=1 // pred_fallthru
      _
    // Predicated region
    $region18: #{tpu_custom_call.1} parent=1 // pred_check
      _
    $region19: #{tpu_custom_call.1} parent=1 // pred_check_branch
      %33 = sbr.rel (0) target = $region21
    $region20: #{tpu_custom_call.1} parent=1 // pred_region
      %35 = vsyncadd [#allocation6], 0
      %s37 = sshll.u32 %s4, 4
      %s38 = int_to_ptr.hbm [resolvable:$true] %s37
      %s39 = sshll.u32 [#allocation5], 4
      %s40 = int_to_ptr.vmem [resolvable:$true] %s39
      %42 = dma.hbm_to_vmem [thread:$0]  %s38, 128, %s40, [#allocation6]
    $region21: #{tpu_custom_call.1} parent=1 // pred_fallthru
      _
    // Predicated region
    $region22: #{tpu_custom_call.1} parent=1 // pred_check
      _
    $region23: #{tpu_custom_call.1} parent=1 // pred_check_branch
      %44 = sbr.rel (0) target = $region25
    $region24: #{tpu_custom_call.1} parent=1 // pred_region
      %46 = dma.done [#allocation3], 256
    $region25: #{tpu_custom_call.1} parent=1 // pred_fallthru
      _
    // Predicated region
    $region26: #{tpu_custom_call.1} parent=1 // pred_check
      _
    $region27: #{tpu_custom_call.1} parent=1 // pred_check_branch
      %48 = sbr.rel (0) target = $region29
    $region28: #{tpu_custom_call.1} parent=1 // pred_region
      %50 = dma.done [#allocation6], 128
    $region29: #{tpu_custom_call.1} parent=1 // pred_fallthru
      _
    %v51 = vld [vmem:[%s0] sm:$0xff]
    %v52 = vld [vmem:[%s0 + $0x8] sm:$0xff]
    %v53 = vld [vmem:[%s0 + $0x10] sm:$0xff]
    %v54 = vld [vmem:[%s0 + $0x18] sm:$0xff]
    %v55 = vld [vmem:[%s0 + $0x20] sm:$0xff]
    %v56 = vld [vmem:[%s0 + $0x28] sm:$0xff]
    %v57 = vld [vmem:[%s3] sm:$0xff]
    %v58 = vld [vmem:[%s3 + $0x8] sm:$0xff]
    %v59 = vld [vmem:[%s3 + $0x10] sm:$0xff]
    %v60 = vld [vmem:[#allocation2] sm:$0xff]
    %s61 = scalar_lea.vmem [#allocation2], 8
    %v62 = vld [vmem:[%s61] sm:$0xff]
    %vm63 = vcmask 64512
    %v65 = vsel %vm63, %v51, 0
    %v68 = vsel %vm63, %v52, 0
    %70 = vmatpush.msra.mxu0 0.0
    %71 = vmatpush.msra.mxu0 0.0
    %72 = vmatpush.msra.mxu0 0.0
    %73 = vmatpush.msra.mxu0 0.0
    %74 = vmatpush.msra.mxu0 0.0
    %75 = vmatpush.msra.mxu0 0.0
    %76 = vmatpush.msra.mxu0 0.0
    %77 = vmatpush.msra.mxu0 0.0
    %78 = vmatpush.msra.mxu0 0.0
    %79 = vmatpush.msra.mxu0 0.0
    %80 = vmatpush.msra.mxu0 0.0
    %81 = vmatpush.msra.mxu0 0.0
    %82 = vmatpush.msra.mxu0 0.0
    %83 = vmatpush.msra.mxu0 0.0
    %84 = vmatpush.msra.mxu0 0.0
    %85 = vmatpush.msra.mxu0 %v60
    %86 = vmatmul.f32.gmra.mxu0 %v65
    %v87 = vpop.f32.mrf.mxu0
    %v88 = vadd.f32 0.0, %v87
    %89 = vmatmul.f32.gmra.mxu0 %v68
    %v90 = vpop.f32.mrf.mxu0
    %v91 = vadd.f32 0.0, %v90
    %92 = vdwg.mxu0
    %v94 = vsel %vm63, %v53, 0
    %v97 = vsel %vm63, %v54, 0
    %99 = vmatpush.msra.mxu0 0.0
    %100 = vmatpush.msra.mxu0 0.0
    %101 = vmatpush.msra.mxu0 0.0
    %102 = vmatpush.msra.mxu0 0.0
    %103 = vmatpush.msra.mxu0 0.0
    %104 = vmatpush.msra.mxu0 0.0
    %105 = vmatpush.msra.mxu0 0.0
    %106 = vmatpush.msra.mxu0 0.0
    %107 = vmatpush.msra.mxu0 0.0
    %108 = vmatpush.msra.mxu0 0.0
    %109 = vmatpush.msra.mxu0 0.0
    %110 = vmatpush.msra.mxu0 0.0
    %111 = vmatpush.msra.mxu0 0.0
    %112 = vmatpush.msra.mxu0 0.0
    %113 = vmatpush.msra.mxu0 0.0
    %114 = vmatpush.msra.mxu0 %v60
    %115 = vmatmul.f32.gmra.mxu0 %v94
    %v116 = vpop.f32.mrf.mxu0
    %v117 = vadd.f32 0.0, %v116
    %118 = vmatmul.f32.gmra.mxu0 %v97
    %v119 = vpop.f32.mrf.mxu0
    %v120 = vadd.f32 0.0, %v119
    %121 = vdwg.mxu0
    %v123 = vsel %vm63, %v55, 0
    %v126 = vsel %vm63, %v56, 0
    %128 = vmatpush.msra.mxu0 0.0
    %129 = vmatpush.msra.mxu0 0.0
    %130 = vmatpush.msra.mxu0 0.0
    %131 = vmatpush.msra.mxu0 0.0
    %132 = vmatpush.msra.mxu0 0.0
    %133 = vmatpush.msra.mxu0 0.0
    %134 = vmatpush.msra.mxu0 0.0
    %135 = vmatpush.msra.mxu0 0.0
    %136 = vmatpush.msra.mxu0 0.0
    %137 = vmatpush.msra.mxu0 0.0
    %138 = vmatpush.msra.mxu0 0.0
    %139 = vmatpush.msra.mxu0 0.0
    %140 = vmatpush.msra.mxu0 0.0
    %141 = vmatpush.msra.mxu0 0.0
    %142 = vmatpush.msra.mxu0 0.0
    %143 = vmatpush.msra.mxu0 %v60
    %144 = vmatmul.f32.gmra.mxu0 %v123
    %v145 = vpop.f32.mrf.mxu0
    %v146 = vadd.f32 0.0, %v145
    %147 = vmatmul.f32.gmra.mxu0 %v126
    %v148 = vpop.f32.mrf.mxu0
    %v149 = vadd.f32 0.0, %v148
    %150 = vdwg.mxu0
    %151 = vmatpush.msra.mxu0 0.0
    %152 = vmatpush.msra.mxu0 0.0
    %153 = vmatpush.msra.mxu0 0.0
    %154 = vmatpush.msra.mxu0 0.0
    %155 = vmatpush.msra.mxu0 0.0
    %156 = vmatpush.msra.mxu0 0.0
    %157 = vmatpush.msra.mxu0 0.0
    %158 = vmatpush.msra.mxu0 0.0
    %159 = vmatpush.msra.mxu0 0.0
    %160 = vmatpush.msra.mxu0 0.0
    %161 = vmatpush.msra.mxu0 0.0
    %162 = vmatpush.msra.mxu0 0.0
    %163 = vmatpush.msra.mxu0 0.0
    %164 = vmatpush.msra.mxu0 0.0
    %165 = vmatpush.msra.mxu0 0.0
    %166 = vmatpush.msra.mxu0 %v62
    %167 = vmatmul.f32.gmra.mxu0 %v65
    %v168 = vpop.f32.mrf.mxu0
    %v169 = vadd.f32 0.0, %v168
    %170 = vmatmul.f32.gmra.mxu0 %v68
    %v171 = vpop.f32.mrf.mxu0
    %v172 = vadd.f32 0.0, %v171
    %173 = vdwg.mxu0
    %174 = vmatpush.msra.mxu0 0.0
    %175 = vmatpush.msra.mxu0 0.0
    %176 = vmatpush.msra.mxu0 0.0
    %177 = vmatpush.msra.mxu0 0.0
    %178 = vmatpush.msra.mxu0 0.0
    %179 = vmatpush.msra.mxu0 0.0
    %180 = vmatpush.msra.mxu0 0.0
    %181 = vmatpush.msra.mxu0 0.0
    %182 = vmatpush.msra.mxu0 0.0
    %183 = vmatpush.msra.mxu0 0.0
    %184 = vmatpush.msra.mxu0 0.0
    %185 = vmatpush.msra.mxu0 0.0
    %186 = vmatpush.msra.mxu0 0.0
    %187 = vmatpush.msra.mxu0 0.0
    %188 = vmatpush.msra.mxu0 0.0
    %189 = vmatpush.msra.mxu0 %v62
    %190 = vmatmul.f32.gmra.mxu0 %v94
    %v191 = vpop.f32.mrf.mxu0
    %v192 = vadd.f32 0.0, %v191
    %193 = vmatmul.f32.gmra.mxu0 %v97
    %v194 = vpop.f32.mrf.mxu0
    %v195 = vadd.f32 0.0, %v194
    %196 = vdwg.mxu0
    %197 = vmatpush.msra.mxu0 0.0
    %198 = vmatpush.msra.mxu0 0.0
    %199 = vmatpush.msra.mxu0 0.0
    %200 = vmatpush.msra.mxu0 0.0
    %201 = vmatpush.msra.mxu0 0.0
    %202 = vmatpush.msra.mxu0 0.0
    %203 = vmatpush.msra.mxu0 0.0
    %204 = vmatpush.msra.mxu0 0.0
    %205 = vmatpush.msra.mxu0 0.0
    %206 = vmatpush.msra.mxu0 0.0
    %207 = vmatpush.msra.mxu0 0.0
    %208 = vmatpush.msra.mxu0 0.0
    %209 = vmatpush.msra.mxu0 0.0
    %210 = vmatpush.msra.mxu0 0.0
    %211 = vmatpush.msra.mxu0 0.0
    %212 = vmatpush.msra.mxu0 %v62
    %213 = vmatmul.f32.gmra.mxu0 %v123
    %v214 = vpop.f32.mrf.mxu0
    %v215 = vadd.f32 0.0, %v214
    %216 = vmatmul.f32.gmra.mxu0 %v126
    %v217 = vpop.f32.mrf.mxu0
    %v218 = vadd.f32 0.0, %v217
    %219 = vdwg.mxu0
    %v220 = vsel %vm63, %v88, 0.0
    %v221 = vsel %vm63, %v91, 0.0
    %v222 = vadd.f32 %v220, %v221
    %v223 = vrot.slane %v222, 4
    %v224 = vadd.f32 %v222, %v223
    %v225 = vrot.slane %v224, 2
    %v226 = vadd.f32 %v224, %v225
    %v227 = vrot.slane %v226, 1
    %v228 = vadd.f32 %v226, %v227
    %v229 = vsel %vm63, %v117, 0.0
    %v230 = vsel %vm63, %v120, 0.0
    %v231 = vadd.f32 %v229, %v230
    %v232 = vrot.slane %v231, 4
    %v233 = vadd.f32 %v231, %v232
    %v234 = vrot.slane %v233, 2
    %v235 = vadd.f32 %v233, %v234
    %v236 = vrot.slane %v235, 1
    %v237 = vadd.f32 %v235, %v236
    %v238 = vsel %vm63, %v146, 0.0
    %v239 = vsel %vm63, %v149, 0.0
    %v240 = vadd.f32 %v238, %v239
    %v241 = vrot.slane %v240, 4
    %v242 = vadd.f32 %v240, %v241
    %v243 = vrot.slane %v242, 2
    %v244 = vadd.f32 %v242, %v243
    %v245 = vrot.slane %v244, 1
    %v246 = vadd.f32 %v244, %v245
    %v247 = vrcp.pop 16.0
    %v248 = vmul.f32 16.0, %v247
    %v249 = vsub.f32 1.0, %v248
    %v250 = vmul.f32 %v247, %v249
    %v251 = vadd.f32 %v247, %v250
    %vm252 = vweird.f32 %v247
    %v253 = vsel %vm252, %v247, %v251
    %v254 = vmul.f32 %v228, %v253
    %v255 = vmul.f32 %v237, %v253
    %v256 = vmul.f32 %v246, %v253
    %v257 = vsub.f32 %v88, %v254
    %v258 = vsub.f32 %v91, %v254
    %v259 = vsub.f32 %v117, %v255
    %v260 = vsub.f32 %v120, %v255
    %v261 = vsub.f32 %v146, %v256
    %v262 = vsub.f32 %v149, %v256
    %v263 = vmul.f32 %v257, %v257
    %v264 = vmul.f32 %v258, %v258
    %v265 = vmul.f32 %v259, %v259
    %v266 = vmul.f32 %v260, %v260
    %v267 = vmul.f32 %v261, %v261
    %v268 = vmul.f32 %v262, %v262
    %v269 = vsel %vm63, %v263, 0.0
    %v270 = vsel %vm63, %v264, 0.0
    %v271 = vadd.f32 %v269, %v270
    %v272 = vrot.slane %v271, 4
    %v273 = vadd.f32 %v271, %v272
    %v274 = vrot.slane %v273, 2
    %v275 = vadd.f32 %v273, %v274
    %v276 = vrot.slane %v275, 1
    %v277 = vadd.f32 %v275, %v276
    %v278 = vsel %vm63, %v265, 0.0
    %v279 = vsel %vm63, %v266, 0.0
    %v280 = vadd.f32 %v278, %v279
    %v281 = vrot.slane %v280, 4
    %v282 = vadd.f32 %v280, %v281
    %v283 = vrot.slane %v282, 2
    %v284 = vadd.f32 %v282, %v283
    %v285 = vrot.slane %v284, 1
    %v286 = vadd.f32 %v284, %v285
    %v287 = vsel %vm63, %v267, 0.0
    %v288 = vsel %vm63, %v268, 0.0
    %v289 = vadd.f32 %v287, %v288
    %v290 = vrot.slane %v289, 4
    %v291 = vadd.f32 %v289, %v290
    %v292 = vrot.slane %v291, 2
    %v293 = vadd.f32 %v291, %v292
    %v294 = vrot.slane %v293, 1
    %v295 = vadd.f32 %v293, %v294
    %v296 = vmul.f32 %v277, %v253
    %v297 = vmul.f32 %v286, %v253
    %v298 = vmul.f32 %v295, %v253
    %v299 = vadd.f32 %v296, 1e-05
    %v300 = vadd.f32 %v297, 1e-05
    %v301 = vadd.f32 %v298, 1e-05
    %v302 = vrsqrt.pop %v299
    %v303 = vmul.f32 %v302, %v299
    %v304 = vmul.f32 %v303, %v302
    %v305 = vmul.f32 0.5, %v304
    %v306 = vsub.f32 1.5, %v305
    %v307 = vmul.f32 %v302, %v306
    %vm308 = vweird.f32 %v299
    %vm309 = vweird.f32 %v302
    %vm310 = vmor %vm308, %vm309
    %v311 = vsel %vm310, %v302, %v307
    %v312 = vrsqrt.pop %v300
    %v313 = vmul.f32 %v312, %v300
    %v314 = vmul.f32 %v313, %v312
    %v315 = vmul.f32 0.5, %v314
    %v316 = vsub.f32 1.5, %v315
    %v317 = vmul.f32 %v312, %v316
    %vm318 = vweird.f32 %v300
    %vm319 = vweird.f32 %v312
    %vm320 = vmor %vm318, %vm319
    %v321 = vsel %vm320, %v312, %v317
    %v322 = vrsqrt.pop %v301
    %v323 = vmul.f32 %v322, %v301
    %v324 = vmul.f32 %v323, %v322
    %v325 = vmul.f32 0.5, %v324
    %v326 = vsub.f32 1.5, %v325
    %v327 = vmul.f32 %v322, %v326
    %vm328 = vweird.f32 %v301
    %vm329 = vweird.f32 %v322
    %vm330 = vmor %vm328, %vm329
    %v331 = vsel %vm330, %v322, %v327
    %v332 = vmul.f32 %v57, %v311
    %v333 = vmul.f32 %v58, %v321
    %v334 = vmul.f32 %v59, %v331
    %v335 = vperm.slane %v332, 0
    %v336 = vperm.slane %v333, 0
    %v337 = vperm.slane %v334, 0
    %v338 = vmul.f32 %v88, %v335
    %v339 = vmul.f32 %v91, %v335
    %v340 = vmul.f32 %v117, %v336
    %v341 = vmul.f32 %v120, %v336
    %v342 = vmul.f32 %v146, %v337
    %v343 = vmul.f32 %v149, %v337
    %v344 = vmul.f32 %v254, %v332
    %v345 = vmul.f32 %v255, %v333
    %v346 = vmul.f32 %v256, %v334
    %v350 = vrot.slane %v344, 6
    %v351 = vrot.slane %v345, 6
    %v352 = vrot.slane %v346, 6
    %v356 = vsub.f32 %v57, %v350
    %v357 = vsub.f32 %v58, %v351
    %v358 = vsub.f32 %v59, %v352
    %v359 = vperm.slane %v356, 2
    %v360 = vperm.slane %v357, 2
    %v361 = vperm.slane %v358, 2
    %v362 = vadd.f32 %v338, %v359
    %v363 = vadd.f32 %v339, %v359
    %v364 = vadd.f32 %v340, %v360
    %v365 = vadd.f32 %v341, %v360
    %v366 = vadd.f32 %v342, %v361
    %v367 = vadd.f32 %v343, %v361
    %v368 = vsel %vm63, %v169, 0.0
    %v369 = vsel %vm63, %v172, 0.0
    %v370 = vadd.f32 %v368, %v369
    %v371 = vrot.slane %v370, 4
    %v372 = vadd.f32 %v370, %v371
    %v373 = vrot.slane %v372, 2
    %v374 = vadd.f32 %v372, %v373
    %v375 = vrot.slane %v374, 1
    %v376 = vadd.f32 %v374, %v375
    %v377 = vsel %vm63, %v192, 0.0
    %v378 = vsel %vm63, %v195, 0.0
    %v379 = vadd.f32 %v377, %v378
    %v380 = vrot.slane %v379, 4
    %v381 = vadd.f32 %v379, %v380
    %v382 = vrot.slane %v381, 2
    %v383 = vadd.f32 %v381, %v382
    %v384 = vrot.slane %v383, 1
    %v385 = vadd.f32 %v383, %v384
    %v386 = vsel %vm63, %v215, 0.0
    %v387 = vsel %vm63, %v218, 0.0
    %v388 = vadd.f32 %v386, %v387
    %v389 = vrot.slane %v388, 4
    %v390 = vadd.f32 %v388, %v389
    %v391 = vrot.slane %v390, 2
    %v392 = vadd.f32 %v390, %v391
    %v393 = vrot.slane %v392, 1
    %v394 = vadd.f32 %v392, %v393
    %v395 = vmul.f32 %v376, %v253
    %v396 = vmul.f32 %v385, %v253
    %v397 = vmul.f32 %v394, %v253
    %v398 = vsub.f32 %v169, %v395
    %v399 = vsub.f32 %v172, %v395
    %v400 = vsub.f32 %v192, %v396
    %v401 = vsub.f32 %v195, %v396
    %v402 = vsub.f32 %v215, %v397
    %v403 = vsub.f32 %v218, %v397
    %v404 = vmul.f32 %v398, %v398
    %v405 = vmul.f32 %v399, %v399
    %v406 = vmul.f32 %v400, %v400
    %v407 = vmul.f32 %v401, %v401
    %v408 = vmul.f32 %v402, %v402
    %v409 = vmul.f32 %v403, %v403
    %v410 = vsel %vm63, %v404, 0.0
    %v411 = vsel %vm63, %v405, 0.0
    %v412 = vadd.f32 %v410, %v411
    %v413 = vrot.slane %v412, 4
    %v414 = vadd.f32 %v412, %v413
    %v415 = vrot.slane %v414, 2
    %v416 = vadd.f32 %v414, %v415
    %v417 = vrot.slane %v416, 1
    %v418 = vadd.f32 %v416, %v417
    %v419 = vsel %vm63, %v406, 0.0
    %v420 = vsel %vm63, %v407, 0.0
    %v421 = vadd.f32 %v419, %v420
    %v422 = vrot.slane %v421, 4
    %v423 = vadd.f32 %v421, %v422
    %v424 = vrot.slane %v423, 2
    %v425 = vadd.f32 %v423, %v424
    %v426 = vrot.slane %v425, 1
    %v427 = vadd.f32 %v425, %v426
    %v428 = vsel %vm63, %v408, 0.0
    %v429 = vsel %vm63, %v409, 0.0
    %v430 = vadd.f32 %v428, %v429
    %v431 = vrot.slane %v430, 4
    %v432 = vadd.f32 %v430, %v431
    %v433 = vrot.slane %v432, 2
    %v434 = vadd.f32 %v432, %v433
    %v435 = vrot.slane %v434, 1
    %v436 = vadd.f32 %v434, %v435
    %v437 = vmul.f32 %v418, %v253
    %v438 = vmul.f32 %v427, %v253
    %v439 = vmul.f32 %v436, %v253
    %v440 = vadd.f32 %v437, 1e-05
    %v441 = vadd.f32 %v438, 1e-05
    %v442 = vadd.f32 %v439, 1e-05
    %v443 = vrsqrt.pop %v440
    %v444 = vmul.f32 %v443, %v440
    %v445 = vmul.f32 %v444, %v443
    %v446 = vmul.f32 0.5, %v445
    %v447 = vsub.f32 1.5, %v446
    %v448 = vmul.f32 %v443, %v447
    %vm449 = vweird.f32 %v440
    %vm450 = vweird.f32 %v443
    %vm451 = vmor %vm449, %vm450
    %v452 = vsel %vm451, %v443, %v448
    %v453 = vrsqrt.pop %v441
    %v454 = vmul.f32 %v453, %v441
    %v455 = vmul.f32 %v454, %v453
    %v456 = vmul.f32 0.5, %v455
    %v457 = vsub.f32 1.5, %v456
    %v458 = vmul.f32 %v453, %v457
    %vm459 = vweird.f32 %v441
    %vm460 = vweird.f32 %v453
    %vm461 = vmor %vm459, %vm460
    %v462 = vsel %vm461, %v453, %v458
    %v463 = vrsqrt.pop %v442
    %v464 = vmul.f32 %v463, %v442
    %v465 = vmul.f32 %v464, %v463
    %v466 = vmul.f32 0.5, %v465
    %v467 = vsub.f32 1.5, %v466
    %v468 = vmul.f32 %v463, %v467
    %vm469 = vweird.f32 %v442
    %vm470 = vweird.f32 %v463
    %vm471 = vmor %vm469, %vm470
    %v472 = vsel %vm471, %v463, %v468
    %v473 = vmul.f32 %v57, %v452
    %v474 = vmul.f32 %v58, %v462
    %v475 = vmul.f32 %v59, %v472
    %v476 = vperm.slane %v473, 1
    %v477 = vperm.slane %v474, 1
    %v478 = vperm.slane %v475, 1
    %v479 = vmul.f32 %v169, %v476
    %v480 = vmul.f32 %v172, %v476
    %v481 = vmul.f32 %v192, %v477
    %v482 = vmul.f32 %v195, %v477
    %v483 = vmul.f32 %v215, %v478
    %v484 = vmul.f32 %v218, %v478
    %v485 = vmul.f32 %v395, %v473
    %v486 = vmul.f32 %v396, %v474
    %v487 = vmul.f32 %v397, %v475
    %v491 = vrot.slane %v485, 6
    %v492 = vrot.slane %v486, 6
    %v493 = vrot.slane %v487, 6
    %v497 = vsub.f32 %v57, %v491
    %v498 = vsub.f32 %v58, %v492
    %v499 = vsub.f32 %v59, %v493
    %v500 = vperm.slane %v497, 3
    %v501 = vperm.slane %v498, 3
    %v502 = vperm.slane %v499, 3
    %v503 = vadd.f32 %v479, %v500
    %v504 = vadd.f32 %v480, %v500
    %v505 = vadd.f32 %v481, %v501
    %v506 = vadd.f32 %v482, %v501
    %v507 = vadd.f32 %v483, %v502
    %v508 = vadd.f32 %v484, %v502
    %v509 = vxor.u32 %v503, 2147483648
    %v510 = vxor.u32 %v504, 2147483648
    %v511 = vxor.u32 %v505, 2147483648
    %v512 = vxor.u32 %v506, 2147483648
    %v513 = vxor.u32 %v507, 2147483648
    %v514 = vxor.u32 %v508, 2147483648
    %v515 = vmul.f32 %v509, 1.442695
    %v516 = vpow.pop %v515
    %v517 = vmul.f32 %v510, 1.442695
    %v518 = vpow.pop %v517
    %v519 = vmul.f32 %v511, 1.442695
    %v520 = vpow.pop %v519
    %v521 = vmul.f32 %v512, 1.442695
    %v522 = vpow.pop %v521
    %v523 = vmul.f32 %v513, 1.442695
    %v524 = vpow.pop %v523
    %v525 = vmul.f32 %v514, 1.442695
    %v526 = vpow.pop %v525
    %v527 = vadd.f32 %v516, 1.0
    %v528 = vadd.f32 %v518, 1.0
    %v529 = vadd.f32 %v520, 1.0
    %v530 = vadd.f32 %v522, 1.0
    %v531 = vadd.f32 %v524, 1.0
    %v532 = vadd.f32 %v526, 1.0
    %v533 = vrcp.pop %v527
    %v534 = vmul.f32 %v527, %v533
    %v535 = vsub.f32 1.0, %v534
    %v536 = vmul.f32 %v533, %v535
    %v537 = vadd.f32 %v533, %v536
    %vm538 = vweird.f32 %v527
    %vm539 = vweird.f32 %v533
    %vm540 = vmor %vm538, %vm539
    %v541 = vsel %vm540, %v533, %v537
    %v542 = vand.u32 2147483647, %v527
    %vm543 = vcmp.eq.f32.partialorder %v542, 8.507059e+37
    %v544 = vand.u32 %v527, 2147483648
    %v545 = vor.u32 1.1754944e-38, %v544
    %v546 = vsel %vm543, %v545, %v541
    %v547 = vmul.f32 1.0, %v546
    %v548 = vrcp.pop %v528
    %v549 = vmul.f32 %v528, %v548
    %v550 = vsub.f32 1.0, %v549
    %v551 = vmul.f32 %v548, %v550
    %v552 = vadd.f32 %v548, %v551
    %vm553 = vweird.f32 %v528
    %vm554 = vweird.f32 %v548
    %vm555 = vmor %vm553, %vm554
    %v556 = vsel %vm555, %v548, %v552
    %v557 = vand.u32 2147483647, %v528
    %vm558 = vcmp.eq.f32.partialorder %v557, 8.507059e+37
    %v559 = vand.u32 %v528, 2147483648
    %v560 = vor.u32 1.1754944e-38, %v559
    %v561 = vsel %vm558, %v560, %v556
    %v562 = vmul.f32 1.0, %v561
    %v563 = vrcp.pop %v529
    %v564 = vmul.f32 %v529, %v563
    %v565 = vsub.f32 1.0, %v564
    %v566 = vmul.f32 %v563, %v565
    %v567 = vadd.f32 %v563, %v566
    %vm568 = vweird.f32 %v529
    %vm569 = vweird.f32 %v563
    %vm570 = vmor %vm568, %vm569
    %v571 = vsel %vm570, %v563, %v567
    %v572 = vand.u32 2147483647, %v529
    %vm573 = vcmp.eq.f32.partialorder %v572, 8.507059e+37
    %v574 = vand.u32 %v529, 2147483648
    %v575 = vor.u32 1.1754944e-38, %v574
    %v576 = vsel %vm573, %v575, %v571
    %v577 = vmul.f32 1.0, %v576
    %v578 = vrcp.pop %v530
    %v579 = vmul.f32 %v530, %v578
    %v580 = vsub.f32 1.0, %v579
    %v581 = vmul.f32 %v578, %v580
    %v582 = vadd.f32 %v578, %v581
    %vm583 = vweird.f32 %v530
    %vm584 = vweird.f32 %v578
    %vm585 = vmor %vm583, %vm584
    %v586 = vsel %vm585, %v578, %v582
    %v587 = vand.u32 2147483647, %v530
    %vm588 = vcmp.eq.f32.partialorder %v587, 8.507059e+37
    %v589 = vand.u32 %v530, 2147483648
    %v590 = vor.u32 1.1754944e-38, %v589
    %v591 = vsel %vm588, %v590, %v586
    %v592 = vmul.f32 1.0, %v591
    %v593 = vrcp.pop %v531
    %v594 = vmul.f32 %v531, %v593
    %v595 = vsub.f32 1.0, %v594
    %v596 = vmul.f32 %v593, %v595
    %v597 = vadd.f32 %v593, %v596
    %vm598 = vweird.f32 %v531
    %vm599 = vweird.f32 %v593
    %vm600 = vmor %vm598, %vm599
    %v601 = vsel %vm600, %v593, %v597
    %v602 = vand.u32 2147483647, %v531
    %vm603 = vcmp.eq.f32.partialorder %v602, 8.507059e+37
    %v604 = vand.u32 %v531, 2147483648
    %v605 = vor.u32 1.1754944e-38, %v604
    %v606 = vsel %vm603, %v605, %v601
    %v607 = vmul.f32 1.0, %v606
    %v608 = vrcp.pop %v532
    %v609 = vmul.f32 %v532, %v608
    %v610 = vsub.f32 1.0, %v609
    %v611 = vmul.f32 %v608, %v610
    %v612 = vadd.f32 %v608, %v611
    %vm613 = vweird.f32 %v532
    %vm614 = vweird.f32 %v608
    %vm615 = vmor %vm613, %vm614
    %v616 = vsel %vm615, %v608, %v612
    %v617 = vand.u32 2147483647, %v532
    %vm618 = vcmp.eq.f32.partialorder %v617, 8.507059e+37
    %v619 = vand.u32 %v532, 2147483648
    %v620 = vor.u32 1.1754944e-38, %v619
    %v621 = vsel %vm618, %v620, %v616
    %v622 = vmul.f32 1.0, %v621
    %v623 = vmul.f32 %v362, %v547
    %v624 = vmul.f32 %v363, %v562
    %v625 = vmul.f32 %v364, %v577
    %v626 = vmul.f32 %v365, %v592
    %v627 = vmul.f32 %v366, %v607
    %v628 = vmul.f32 %v367, %v622
    %v629 = vld [vmem:[%s2] sm:$0xff]
    %v630 = vld [vmem:[%s2 + $0x8] sm:$0xff]
    %v631 = vld [vmem:[%s2 + $0x10] sm:$0xff]
    %v633 = vsel %vm63, %v623, 0
    %v636 = vsel %vm63, %v624, 0
    %638 = vmatpush.msra.mxu0 0.0
    %639 = vmatpush.msra.mxu0 0.0
    %640 = vmatpush.msra.mxu0 0.0
    %641 = vmatpush.msra.mxu0 0.0
    %642 = vmatpush.msra.mxu0 0.0
    %643 = vmatpush.msra.mxu0 0.0
    %644 = vmatpush.msra.mxu0 0.0
    %645 = vmatpush.msra.mxu0 0.0
    %646 = vmatpush.msra.mxu0 0.0
    %647 = vmatpush.msra.mxu0 0.0
    %648 = vmatpush.msra.mxu0 0.0
    %649 = vmatpush.msra.mxu0 0.0
    %650 = vmatpush.msra.mxu0 0.0
    %651 = vmatpush.msra.mxu0 0.0
    %652 = vmatpush.msra.mxu0 0.0
    %653 = vmatpush.msra.mxu0 %v629
    %654 = vmatmul.f32.gmra.mxu0 %v633
    %v655 = vpop.f32.mrf.mxu0
    %v656 = vadd.f32 0.0, %v655
    %657 = vmatmul.f32.gmra.mxu0 %v636
    %v658 = vpop.f32.mrf.mxu0
    %v659 = vadd.f32 0.0, %v658
    %660 = vdwg.mxu0
    %v662 = vsel %vm63, %v625, 0
    %v665 = vsel %vm63, %v626, 0
    %667 = vmatpush.msra.mxu0 0.0
    %668 = vmatpush.msra.mxu0 0.0
    %669 = vmatpush.msra.mxu0 0.0
    %670 = vmatpush.msra.mxu0 0.0
    %671 = vmatpush.msra.mxu0 0.0
    %672 = vmatpush.msra.mxu0 0.0
    %673 = vmatpush.msra.mxu0 0.0
    %674 = vmatpush.msra.mxu0 0.0
    %675 = vmatpush.msra.mxu0 0.0
    %676 = vmatpush.msra.mxu0 0.0
    %677 = vmatpush.msra.mxu0 0.0
    %678 = vmatpush.msra.mxu0 0.0
    %679 = vmatpush.msra.mxu0 0.0
    %680 = vmatpush.msra.mxu0 0.0
    %681 = vmatpush.msra.mxu0 0.0
    %682 = vmatpush.msra.mxu0 %v630
    %683 = vmatmul.f32.gmra.mxu0 %v662
    %v684 = vpop.f32.mrf.mxu0
    %v685 = vadd.f32 0.0, %v684
    %686 = vmatmul.f32.gmra.mxu0 %v665
    %v687 = vpop.f32.mrf.mxu0
    %v688 = vadd.f32 0.0, %v687
    %689 = vdwg.mxu0
    %v691 = vsel %vm63, %v627, 0
    %v694 = vsel %vm63, %v628, 0
    %696 = vmatpush.msra.mxu0 0.0
    %697 = vmatpush.msra.mxu0 0.0
    %698 = vmatpush.msra.mxu0 0.0
    %699 = vmatpush.msra.mxu0 0.0
    %700 = vmatpush.msra.mxu0 0.0
    %701 = vmatpush.msra.mxu0 0.0
    %702 = vmatpush.msra.mxu0 0.0
    %703 = vmatpush.msra.mxu0 0.0
    %704 = vmatpush.msra.mxu0 0.0
    %705 = vmatpush.msra.mxu0 0.0
    %706 = vmatpush.msra.mxu0 0.0
    %707 = vmatpush.msra.mxu0 0.0
    %708 = vmatpush.msra.mxu0 0.0
    %709 = vmatpush.msra.mxu0 0.0
    %710 = vmatpush.msra.mxu0 0.0
    %711 = vmatpush.msra.mxu0 %v631
    %712 = vmatmul.f32.gmra.mxu0 %v691
    %v713 = vpop.f32.mrf.mxu0
    %v714 = vadd.f32 0.0, %v713
    %715 = vmatmul.f32.gmra.mxu0 %v694
    %v716 = vpop.f32.mrf.mxu0
    %v717 = vadd.f32 0.0, %v716
    %718 = vdwg.mxu0
    %s719 = scalar_lea.vmem %s2, 24
    %v720 = vld [vmem:[%s719] sm:$0xff]
    %v721 = vld [vmem:[%s719 + $0x8] sm:$0xff]
    %v722 = vld [vmem:[%s719 + $0x10] sm:$0xff]
    %723 = vmatpush.msra.mxu0 0.0
    %724 = vmatpush.msra.mxu0 0.0
    %725 = vmatpush.msra.mxu0 0.0
    %726 = vmatpush.msra.mxu0 0.0
    %727 = vmatpush.msra.mxu0 0.0
    %728 = vmatpush.msra.mxu0 0.0
    %729 = vmatpush.msra.mxu0 0.0
    %730 = vmatpush.msra.mxu0 0.0
    %731 = vmatpush.msra.mxu0 0.0
    %732 = vmatpush.msra.mxu0 0.0
    %733 = vmatpush.msra.mxu0 0.0
    %734 = vmatpush.msra.mxu0 0.0
    %735 = vmatpush.msra.mxu0 0.0
    %736 = vmatpush.msra.mxu0 0.0
    %737 = vmatpush.msra.mxu0 0.0
    %738 = vmatpush.msra.mxu0 %v720
    %739 = vmatmul.f32.gmra.mxu0 %v633
    %v740 = vpop.f32.mrf.mxu0
    %v741 = vadd.f32 0.0, %v740
    %742 = vmatmul.f32.gmra.mxu0 %v636
    %v743 = vpop.f32.mrf.mxu0
    %v744 = vadd.f32 0.0, %v743
    %745 = vdwg.mxu0
    %746 = vmatpush.msra.mxu0 0.0
    %747 = vmatpush.msra.mxu0 0.0
    %748 = vmatpush.msra.mxu0 0.0
    %749 = vmatpush.msra.mxu0 0.0
    %750 = vmatpush.msra.mxu0 0.0
    %751 = vmatpush.msra.mxu0 0.0
    %752 = vmatpush.msra.mxu0 0.0
    %753 = vmatpush.msra.mxu0 0.0
    %754 = vmatpush.msra.mxu0 0.0
    %755 = vmatpush.msra.mxu0 0.0
    %756 = vmatpush.msra.mxu0 0.0
    %757 = vmatpush.msra.mxu0 0.0
    %758 = vmatpush.msra.mxu0 0.0
    %759 = vmatpush.msra.mxu0 0.0
    %760 = vmatpush.msra.mxu0 0.0
    %761 = vmatpush.msra.mxu0 %v721
    %762 = vmatmul.f32.gmra.mxu0 %v662
    %v763 = vpop.f32.mrf.mxu0
    %v764 = vadd.f32 0.0, %v763
    %765 = vmatmul.f32.gmra.mxu0 %v665
    %v766 = vpop.f32.mrf.mxu0
    %v767 = vadd.f32 0.0, %v766
    %768 = vdwg.mxu0
    %769 = vmatpush.msra.mxu0 0.0
    %770 = vmatpush.msra.mxu0 0.0
    %771 = vmatpush.msra.mxu0 0.0
    %772 = vmatpush.msra.mxu0 0.0
    %773 = vmatpush.msra.mxu0 0.0
    %774 = vmatpush.msra.mxu0 0.0
    %775 = vmatpush.msra.mxu0 0.0
    %776 = vmatpush.msra.mxu0 0.0
    %777 = vmatpush.msra.mxu0 0.0
    %778 = vmatpush.msra.mxu0 0.0
    %779 = vmatpush.msra.mxu0 0.0
    %780 = vmatpush.msra.mxu0 0.0
    %781 = vmatpush.msra.mxu0 0.0
    %782 = vmatpush.msra.mxu0 0.0
    %783 = vmatpush.msra.mxu0 0.0
    %784 = vmatpush.msra.mxu0 %v722
    %785 = vmatmul.f32.gmra.mxu0 %v691
    %v786 = vpop.f32.mrf.mxu0
    %v787 = vadd.f32 0.0, %v786
    %788 = vmatmul.f32.gmra.mxu0 %v694
    %v789 = vpop.f32.mrf.mxu0
    %v790 = vadd.f32 0.0, %v789
    %791 = vdwg.mxu0
    %v792 = vsel %vm63, %v656, 0.0
    %v793 = vsel %vm63, %v659, 0.0
    %v794 = vadd.f32 %v792, %v793
    %v795 = vrot.slane %v794, 4
    %v796 = vadd.f32 %v794, %v795
    %v797 = vrot.slane %v796, 2
    %v798 = vadd.f32 %v796, %v797
    %v799 = vrot.slane %v798, 1
    %v800 = vadd.f32 %v798, %v799
    %v801 = vsel %vm63, %v685, 0.0
    %v802 = vsel %vm63, %v688, 0.0
    %v803 = vadd.f32 %v801, %v802
    %v804 = vrot.slane %v803, 4
    %v805 = vadd.f32 %v803, %v804
    %v806 = vrot.slane %v805, 2
    %v807 = vadd.f32 %v805, %v806
    %v808 = vrot.slane %v807, 1
    %v809 = vadd.f32 %v807, %v808
    %v810 = vsel %vm63, %v714, 0.0
    %v811 = vsel %vm63, %v717, 0.0
    %v812 = vadd.f32 %v810, %v811
    %v813 = vrot.slane %v812, 4
    %v814 = vadd.f32 %v812, %v813
    %v815 = vrot.slane %v814, 2
    %v816 = vadd.f32 %v814, %v815
    %v817 = vrot.slane %v816, 1
    %v818 = vadd.f32 %v816, %v817
    %v819 = vmul.f32 %v800, %v253
    %v820 = vmul.f32 %v809, %v253
    %v821 = vmul.f32 %v818, %v253
    %v822 = vsub.f32 %v656, %v819
    %v823 = vsub.f32 %v659, %v819
    %v824 = vsub.f32 %v685, %v820
    %v825 = vsub.f32 %v688, %v820
    %v826 = vsub.f32 %v714, %v821
    %v827 = vsub.f32 %v717, %v821
    %v828 = vmul.f32 %v822, %v822
    %v829 = vmul.f32 %v823, %v823
    %v830 = vmul.f32 %v824, %v824
    %v831 = vmul.f32 %v825, %v825
    %v832 = vmul.f32 %v826, %v826
    %v833 = vmul.f32 %v827, %v827
    %v834 = vsel %vm63, %v828, 0.0
    %v835 = vsel %vm63, %v829, 0.0
    %v836 = vadd.f32 %v834, %v835
    %v837 = vrot.slane %v836, 4
    %v838 = vadd.f32 %v836, %v837
    %v839 = vrot.slane %v838, 2
    %v840 = vadd.f32 %v838, %v839
    %v841 = vrot.slane %v840, 1
    %v842 = vadd.f32 %v840, %v841
    %v843 = vsel %vm63, %v830, 0.0
    %v844 = vsel %vm63, %v831, 0.0
    %v845 = vadd.f32 %v843, %v844
    %v846 = vrot.slane %v845, 4
    %v847 = vadd.f32 %v845, %v846
    %v848 = vrot.slane %v847, 2
    %v849 = vadd.f32 %v847, %v848
    %v850 = vrot.slane %v849, 1
    %v851 = vadd.f32 %v849, %v850
    %v852 = vsel %vm63, %v832, 0.0
    %v853 = vsel %vm63, %v833, 0.0
    %v854 = vadd.f32 %v852, %v853
    %v855 = vrot.slane %v854, 4
    %v856 = vadd.f32 %v854, %v855
    %v857 = vrot.slane %v856, 2
    %v858 = vadd.f32 %v856, %v857
    %v859 = vrot.slane %v858, 1
    %v860 = vadd.f32 %v858, %v859
    %v861 = vmul.f32 %v842, %v253
    %v862 = vmul.f32 %v851, %v253
    %v863 = vmul.f32 %v860, %v253
    %v864 = vadd.f32 %v861, 1e-05
    %v865 = vadd.f32 %v862, 1e-05
    %v866 = vadd.f32 %v863, 1e-05
    %v867 = vrsqrt.pop %v864
    %v868 = vmul.f32 %v867, %v864
    %v869 = vmul.f32 %v868, %v867
    %v870 = vmul.f32 0.5, %v869
    %v871 = vsub.f32 1.5, %v870
    %v872 = vmul.f32 %v867, %v871
    %vm873 = vweird.f32 %v864
    %vm874 = vweird.f32 %v867
    %vm875 = vmor %vm873, %vm874
    %v876 = vsel %vm875, %v867, %v872
    %v877 = vrsqrt.pop %v865
    %v878 = vmul.f32 %v877, %v865
    %v879 = vmul.f32 %v878, %v877
    %v880 = vmul.f32 0.5, %v879
    %v881 = vsub.f32 1.5, %v880
    %v882 = vmul.f32 %v877, %v881
    %vm883 = vweird.f32 %v865
    %vm884 = vweird.f32 %v877
    %vm885 = vmor %vm883, %vm884
    %v886 = vsel %vm885, %v877, %v882
    %v887 = vrsqrt.pop %v866
    %v888 = vmul.f32 %v887, %v866
    %v889 = vmul.f32 %v888, %v887
    %v890 = vmul.f32 0.5, %v889
    %v891 = vsub.f32 1.5, %v890
    %v892 = vmul.f32 %v887, %v891
    %vm893 = vweird.f32 %v866
    %vm894 = vweird.f32 %v887
    %vm895 = vmor %vm893, %vm894
    %v896 = vsel %vm895, %v887, %v892
    %v897 = vmul.f32 %v57, %v876
    %v898 = vmul.f32 %v58, %v886
    %v899 = vmul.f32 %v59, %v896
    %v900 = vperm.slane %v897, 4
    %v901 = vperm.slane %v898, 4
    %v902 = vperm.slane %v899, 4
    %v903 = vmul.f32 %v656, %v900
    %v904 = vmul.f32 %v659, %v900
    %v905 = vmul.f32 %v685, %v901
    %v906 = vmul.f32 %v688, %v901
    %v907 = vmul.f32 %v714, %v902
    %v908 = vmul.f32 %v717, %v902
    %v909 = vmul.f32 %v819, %v897
    %v910 = vmul.f32 %v820, %v898
    %v911 = vmul.f32 %v821, %v899
    %v915 = vrot.slane %v909, 6
    %v916 = vrot.slane %v910, 6
    %v917 = vrot.slane %v911, 6
    %v921 = vsub.f32 %v57, %v915
    %v922 = vsub.f32 %v58, %v916
    %v923 = vsub.f32 %v59, %v917
    %v924 = vperm.slane %v921, 6
    %v925 = vperm.slane %v922, 6
    %v926 = vperm.slane %v923, 6
    %v927 = vadd.f32 %v903, %v924
    %v928 = vadd.f32 %v904, %v924
    %v929 = vadd.f32 %v905, %v925
    %v930 = vadd.f32 %v906, %v925
    %v931 = vadd.f32 %v907, %v926
    %v932 = vadd.f32 %v908, %v926
    %v933 = vsel %vm63, %v741, 0.0
    %v934 = vsel %vm63, %v744, 0.0
    %v935 = vadd.f32 %v933, %v934
    %v936 = vrot.slane %v935, 4
    %v937 = vadd.f32 %v935, %v936
    %v938 = vrot.slane %v937, 2
    %v939 = vadd.f32 %v937, %v938
    %v940 = vrot.slane %v939, 1
    %v941 = vadd.f32 %v939, %v940
    %v942 = vsel %vm63, %v764, 0.0
    %v943 = vsel %vm63, %v767, 0.0
    %v944 = vadd.f32 %v942, %v943
    %v945 = vrot.slane %v944, 4
    %v946 = vadd.f32 %v944, %v945
    %v947 = vrot.slane %v946, 2
    %v948 = vadd.f32 %v946, %v947
    %v949 = vrot.slane %v948, 1
    %v950 = vadd.f32 %v948, %v949
    %v951 = vsel %vm63, %v787, 0.0
    %v952 = vsel %vm63, %v790, 0.0
    %v953 = vadd.f32 %v951, %v952
    %v954 = vrot.slane %v953, 4
    %v955 = vadd.f32 %v953, %v954
    %v956 = vrot.slane %v955, 2
    %v957 = vadd.f32 %v955, %v956
    %v958 = vrot.slane %v957, 1
    %v959 = vadd.f32 %v957, %v958
    %v960 = vmul.f32 %v941, %v253
    %v961 = vmul.f32 %v950, %v253
    %v962 = vmul.f32 %v959, %v253
    %v963 = vsub.f32 %v741, %v960
    %v964 = vsub.f32 %v744, %v960
    %v965 = vsub.f32 %v764, %v961
    %v966 = vsub.f32 %v767, %v961
    %v967 = vsub.f32 %v787, %v962
    %v968 = vsub.f32 %v790, %v962
    %v969 = vmul.f32 %v963, %v963
    %v970 = vmul.f32 %v964, %v964
    %v971 = vmul.f32 %v965, %v965
    %v972 = vmul.f32 %v966, %v966
    %v973 = vmul.f32 %v967, %v967
    %v974 = vmul.f32 %v968, %v968
    %v975 = vsel %vm63, %v969, 0.0
    %v976 = vsel %vm63, %v970, 0.0
    %v977 = vadd.f32 %v975, %v976
    %v978 = vrot.slane %v977, 4
    %v979 = vadd.f32 %v977, %v978
    %v980 = vrot.slane %v979, 2
    %v981 = vadd.f32 %v979, %v980
    %v982 = vrot.slane %v981, 1
    %v983 = vadd.f32 %v981, %v982
    %v984 = vsel %vm63, %v971, 0.0
    %v985 = vsel %vm63, %v972, 0.0
    %v986 = vadd.f32 %v984, %v985
    %v987 = vrot.slane %v986, 4
    %v988 = vadd.f32 %v986, %v987
    %v989 = vrot.slane %v988, 2
    %v990 = vadd.f32 %v988, %v989
    %v991 = vrot.slane %v990, 1
    %v992 = vadd.f32 %v990, %v991
    %v993 = vsel %vm63, %v973, 0.0
    %v994 = vsel %vm63, %v974, 0.0
    %v995 = vadd.f32 %v993, %v994
    %v996 = vrot.slane %v995, 4
    %v997 = vadd.f32 %v995, %v996
    %v998 = vrot.slane %v997, 2
    %v999 = vadd.f32 %v997, %v998
    %v1000 = vrot.slane %v999, 1
    %v1001 = vadd.f32 %v999, %v1000
    %v1002 = vmul.f32 %v983, %v253
    %v1003 = vmul.f32 %v992, %v253
    %v1004 = vmul.f32 %v1001, %v253
    %v1005 = vadd.f32 %v1002, 1e-05
    %v1006 = vadd.f32 %v1003, 1e-05
    %v1007 = vadd.f32 %v1004, 1e-05
    %v1008 = vrsqrt.pop %v1005
    %v1009 = vmul.f32 %v1008, %v1005
    %v1010 = vmul.f32 %v1009, %v1008
    %v1011 = vmul.f32 0.5, %v1010
    %v1012 = vsub.f32 1.5, %v1011
    %v1013 = vmul.f32 %v1008, %v1012
    %vm1014 = vweird.f32 %v1005
    %vm1015 = vweird.f32 %v1008
    %vm1016 = vmor %vm1014, %vm1015
    %v1017 = vsel %vm1016, %v1008, %v1013
    %v1018 = vrsqrt.pop %v1006
    %v1019 = vmul.f32 %v1018, %v1006
    %v1020 = vmul.f32 %v1019, %v1018
    %v1021 = vmul.f32 0.5, %v1020
    %v1022 = vsub.f32 1.5, %v1021
    %v1023 = vmul.f32 %v1018, %v1022
    %vm1024 = vweird.f32 %v1006
    %vm1025 = vweird.f32 %v1018
    %vm1026 = vmor %vm1024, %vm1025
    %v1027 = vsel %vm1026, %v1018, %v1023
    %v1028 = vrsqrt.pop %v1007
    %v1029 = vmul.f32 %v1028, %v1007
    %v1030 = vmul.f32 %v1029, %v1028
    %v1031 = vmul.f32 0.5, %v1030
    %v1032 = vsub.f32 1.5, %v1031
    %v1033 = vmul.f32 %v1028, %v1032
    %vm1034 = vweird.f32 %v1007
    %vm1035 = vweird.f32 %v1028
    %vm1036 = vmor %vm1034, %vm1035
    %v1037 = vsel %vm1036, %v1028, %v1033
    %v1038 = vmul.f32 %v57, %v1017
    %v1039 = vmul.f32 %v58, %v1027
    %v1040 = vmul.f32 %v59, %v1037
    %v1041 = vperm.slane %v1038, 5
    %v1042 = vperm.slane %v1039, 5
    %v1043 = vperm.slane %v1040, 5
    %v1044 = vmul.f32 %v741, %v1041
    %v1045 = vmul.f32 %v744, %v1041
    %v1046 = vmul.f32 %v764, %v1042
    %v1047 = vmul.f32 %v767, %v1042
    %v1048 = vmul.f32 %v787, %v1043
    %v1049 = vmul.f32 %v790, %v1043
    %v1050 = vmul.f32 %v960, %v1038
    %v1051 = vmul.f32 %v961, %v1039
    %v1052 = vmul.f32 %v962, %v1040
    %v1056 = vrot.slane %v1050, 6
    %v1057 = vrot.slane %v1051, 6
    %v1058 = vrot.slane %v1052, 6
    %v1062 = vsub.f32 %v57, %v1056
    %v1063 = vsub.f32 %v58, %v1057
    %v1064 = vsub.f32 %v59, %v1058
    %v1065 = vperm.slane %v1062, 7
    %v1066 = vperm.slane %v1063, 7
    %v1067 = vperm.slane %v1064, 7
    %v1068 = vadd.f32 %v1044, %v1065
    %v1069 = vadd.f32 %v1045, %v1065
    %v1070 = vadd.f32 %v1046, %v1066
    %v1071 = vadd.f32 %v1047, %v1066
    %v1072 = vadd.f32 %v1048, %v1067
    %v1073 = vadd.f32 %v1049, %v1067
    %v1074 = vxor.u32 %v1068, 2147483648
    %v1075 = vxor.u32 %v1069, 2147483648
    %v1076 = vxor.u32 %v1070, 2147483648
    %v1077 = vxor.u32 %v1071, 2147483648
    %v1078 = vxor.u32 %v1072, 2147483648
    %v1079 = vxor.u32 %v1073, 2147483648
    %v1080 = vmul.f32 %v1074, 1.442695
    %v1081 = vpow.pop %v1080
    %v1082 = vmul.f32 %v1075, 1.442695
    %v1083 = vpow.pop %v1082
    %v1084 = vmul.f32 %v1076, 1.442695
    %v1085 = vpow.pop %v1084
    %v1086 = vmul.f32 %v1077, 1.442695
    %v1087 = vpow.pop %v1086
    %v1088 = vmul.f32 %v1078, 1.442695
    %v1089 = vpow.pop %v1088
    %v1090 = vmul.f32 %v1079, 1.442695
    %v1091 = vpow.pop %v1090
    %v1092 = vadd.f32 %v1081, 1.0
    %v1093 = vadd.f32 %v1083, 1.0
    %v1094 = vadd.f32 %v1085, 1.0
    %v1095 = vadd.f32 %v1087, 1.0
    %v1096 = vadd.f32 %v1089, 1.0
    %v1097 = vadd.f32 %v1091, 1.0
    %v1098 = vrcp.pop %v1092
    %v1099 = vmul.f32 %v1092, %v1098
    %v1100 = vsub.f32 1.0, %v1099
    %v1101 = vmul.f32 %v1098, %v1100
    %v1102 = vadd.f32 %v1098, %v1101
    %vm1103 = vweird.f32 %v1092
    %vm1104 = vweird.f32 %v1098
    %vm1105 = vmor %vm1103, %vm1104
    %v1106 = vsel %vm1105, %v1098, %v1102
    %v1107 = vand.u32 2147483647, %v1092
    %vm1108 = vcmp.eq.f32.partialorder %v1107, 8.507059e+37
    %v1109 = vand.u32 %v1092, 2147483648
    %v1110 = vor.u32 1.1754944e-38, %v1109
    %v1111 = vsel %vm1108, %v1110, %v1106
    %v1112 = vmul.f32 1.0, %v1111
    %v1113 = vrcp.pop %v1093
    %v1114 = vmul.f32 %v1093, %v1113
    %v1115 = vsub.f32 1.0, %v1114
    %v1116 = vmul.f32 %v1113, %v1115
    %v1117 = vadd.f32 %v1113, %v1116
    %vm1118 = vweird.f32 %v1093
    %vm1119 = vweird.f32 %v1113
    %vm1120 = vmor %vm1118, %vm1119
    %v1121 = vsel %vm1120, %v1113, %v1117
    %v1122 = vand.u32 2147483647, %v1093
    %vm1123 = vcmp.eq.f32.partialorder %v1122, 8.507059e+37
    %v1124 = vand.u32 %v1093, 2147483648
    %v1125 = vor.u32 1.1754944e-38, %v1124
    %v1126 = vsel %vm1123, %v1125, %v1121
    %v1127 = vmul.f32 1.0, %v1126
    %v1128 = vrcp.pop %v1094
    %v1129 = vmul.f32 %v1094, %v1128
    %v1130 = vsub.f32 1.0, %v1129
    %v1131 = vmul.f32 %v1128, %v1130
    %v1132 = vadd.f32 %v1128, %v1131
    %vm1133 = vweird.f32 %v1094
    %vm1134 = vweird.f32 %v1128
    %vm1135 = vmor %vm1133, %vm1134
    %v1136 = vsel %vm1135, %v1128, %v1132
    %v1137 = vand.u32 2147483647, %v1094
    %vm1138 = vcmp.eq.f32.partialorder %v1137, 8.507059e+37
    %v1139 = vand.u32 %v1094, 2147483648
    %v1140 = vor.u32 1.1754944e-38, %v1139
    %v1141 = vsel %vm1138, %v1140, %v1136
    %v1142 = vmul.f32 1.0, %v1141
    %v1143 = vrcp.pop %v1095
    %v1144 = vmul.f32 %v1095, %v1143
    %v1145 = vsub.f32 1.0, %v1144
    %v1146 = vmul.f32 %v1143, %v1145
    %v1147 = vadd.f32 %v1143, %v1146
    %vm1148 = vweird.f32 %v1095
    %vm1149 = vweird.f32 %v1143
    %vm1150 = vmor %vm1148, %vm1149
    %v1151 = vsel %vm1150, %v1143, %v1147
    %v1152 = vand.u32 2147483647, %v1095
    %vm1153 = vcmp.eq.f32.partialorder %v1152, 8.507059e+37
    %v1154 = vand.u32 %v1095, 2147483648
    %v1155 = vor.u32 1.1754944e-38, %v1154
    %v1156 = vsel %vm1153, %v1155, %v1151
    %v1157 = vmul.f32 1.0, %v1156
    %v1158 = vrcp.pop %v1096
    %v1159 = vmul.f32 %v1096, %v1158
    %v1160 = vsub.f32 1.0, %v1159
    %v1161 = vmul.f32 %v1158, %v1160
    %v1162 = vadd.f32 %v1158, %v1161
    %vm1163 = vweird.f32 %v1096
    %vm1164 = vweird.f32 %v1158
    %vm1165 = vmor %vm1163, %vm1164
    %v1166 = vsel %vm1165, %v1158, %v1162
    %v1167 = vand.u32 2147483647, %v1096
    %vm1168 = vcmp.eq.f32.partialorder %v1167, 8.507059e+37
    %v1169 = vand.u32 %v1096, 2147483648
    %v1170 = vor.u32 1.1754944e-38, %v1169
    %v1171 = vsel %vm1168, %v1170, %v1166
    %v1172 = vmul.f32 1.0, %v1171
    %v1173 = vrcp.pop %v1097
    %v1174 = vmul.f32 %v1097, %v1173
    %v1175 = vsub.f32 1.0, %v1174
    %v1176 = vmul.f32 %v1173, %v1175
    %v1177 = vadd.f32 %v1173, %v1176
    %vm1178 = vweird.f32 %v1097
    %vm1179 = vweird.f32 %v1173
    %vm1180 = vmor %vm1178, %vm1179
    %v1181 = vsel %vm1180, %v1173, %v1177
    %v1182 = vand.u32 2147483647, %v1097
    %vm1183 = vcmp.eq.f32.partialorder %v1182, 8.507059e+37
    %v1184 = vand.u32 %v1097, 2147483648
    %v1185 = vor.u32 1.1754944e-38, %v1184
    %v1186 = vsel %vm1183, %v1185, %v1181
    %v1187 = vmul.f32 1.0, %v1186
    %v1188 = vmul.f32 %v927, %v1112
    %v1189 = vmul.f32 %v928, %v1127
    %v1190 = vmul.f32 %v929, %v1142
    %v1191 = vmul.f32 %v930, %v1157
    %v1192 = vmul.f32 %v931, %v1172
    %v1193 = vmul.f32 %v932, %v1187
    %v1194 = vadd.f32 %v623, %v1188
    %v1195 = vadd.f32 %v624, %v1189
    %v1196 = vadd.f32 %v625, %v1190
    %v1197 = vadd.f32 %v626, %v1191
    %v1198 = vadd.f32 %v627, %v1192
    %v1199 = vadd.f32 %v628, %v1193
    %v1200 = vsel %vm63, %v1194, 0.0
    %v1201 = vsel %vm63, %v1196, 0.0
    %v1202 = vadd.f32 %v1200, %v1201
    %v1203 = vsel %vm63, %v1198, 0.0
    %v1204 = vadd.f32 %v1202, %v1203
    %v1205 = vsel %vm63, %v1195, 0.0
    %v1206 = vsel %vm63, %v1197, 0.0
    %v1207 = vadd.f32 %v1205, %v1206
    %v1208 = vsel %vm63, %v1199, 0.0
    %v1209 = vadd.f32 %v1207, %v1208
    %v1210 = vmul.f32 %v1204, 0.70710677
    %v1211 = vmul.f32 %v1209, 0.70710677
    %v1212 = vld [vmem:[#allocation5] sm:$0xff]
    %v1214 = vsel %vm63, %v1210, 0
    %v1217 = vsel %vm63, %v1211, 0
    %1219 = vmatpush.msra.mxu0 0.0
    %1220 = vmatpush.msra.mxu0 0.0
    %1221 = vmatpush.msra.mxu0 0.0
    %1222 = vmatpush.msra.mxu0 0.0
    %1223 = vmatpush.msra.mxu0 0.0
    %1224 = vmatpush.msra.mxu0 0.0
    %1225 = vmatpush.msra.mxu0 0.0
    %1226 = vmatpush.msra.mxu0 0.0
    %1227 = vmatpush.msra.mxu0 0.0
    %1228 = vmatpush.msra.mxu0 0.0
    %1229 = vmatpush.msra.mxu0 0.0
    %1230 = vmatpush.msra.mxu0 0.0
    %1231 = vmatpush.msra.mxu0 0.0
    %1232 = vmatpush.msra.mxu0 0.0
    %1233 = vmatpush.msra.mxu0 0.0
    %1234 = vmatpush.msra.mxu0 %v1212
    %1235 = vmatmul.f32.gmra.mxu0 %v1214
    %v1236 = vpop.f32.mrf.mxu0
    %v1237 = vadd.f32 0.0, %v1236
    %1238 = vmatmul.f32.gmra.mxu0 %v1217
    %v1239 = vpop.f32.mrf.mxu0
    %v1240 = vadd.f32 0.0, %v1239
    %1241 = vdwg.mxu0
    %vm1242 = vcmask 130048
    %1243 = vst.msk [vmem:[#allocation7] sm:$0xff] %vm1242, %v1237
    %1244 = vst.msk [vmem:[#allocation7 + $0x8] sm:$0xff] %vm1242, %v1240
    // Predicated region
    $region30: #{tpu_custom_call.1} parent=1 // pred_check
      _
    $region31: #{tpu_custom_call.1} parent=1 // pred_check_branch
      %1246 = sbr.rel (0) target = $region33
    $region32: #{tpu_custom_call.1} parent=1 // pred_region
      %1248 = vsyncadd [#allocation4], 0
      %s1249 = sshll.u32 [#allocation7], 4
      %s1250 = int_to_ptr.vmem [resolvable:$true] %s1249
      %s1251 = sshll.u32 %s5, 4
      %s1252 = int_to_ptr.hbm [resolvable:$true] %s1251
      %1257 = dma.vmem_to_hbm [thread:$0]  %s1250, 256, %s1252, [#allocation4], 128, 128, 8
    $region33: #{tpu_custom_call.1} parent=1 // pred_fallthru
      _
    // Predicated region
    $region34: #{tpu_custom_call.1} parent=1 // pred_check
      _
    $region35: #{tpu_custom_call.1} parent=1 // pred_check_branch
      %1259 = sbr.rel (0) target = $region37
    $region36: #{tpu_custom_call.1} parent=1 // pred_region
      %1261 = dma.done [#allocation4], 256
    $region37: #{tpu_custom_call.1} parent=1 // pred_fallthru
      _
    %1262 = vsyncpa [#allocation3], 1
    %1263 = vsyncpa [#allocation6], 1
    %1264 = vsyncpa [#allocation4], 1

</llo_original>
